<compile_context>
chip_gen: v7x
topology: tpu7x:2x2x1
jax: 0.10.0
libtpu: 0.0.40
codegen_flags: <defaults>
</compile_context>

<pallas_src>
import math
import functools

import numpy as np
import jax
import jax.numpy as jnp
from jax import lax
from jax.experimental import pallas as pl
from jax.experimental.pallas import tpu as pltpu


_VMEM_LIMIT = 64 * 1024 * 1024  # raise scoped VMEM (defaults: 16 MiB v5e / 32 MiB v6e,v7x)


# ------------------------------ tiling helper --------------------------------

def _pick_tile(dim, target, multiple):
    """Largest tile <= target that divides dim and is a multiple of `multiple`.
    Falls back to the full dim (block == array dim keeps the BlockSpec legal)."""
    if dim <= target:
        return dim
    t = (target // multiple) * multiple
    while t >= multiple:
        if dim % t == 0:
            return t
        t -= multiple
    return dim


# ----------------------------- projection kernel -----------------------------

def _linear_kernel(x_ref, w_ref, b_ref, o_ref, acc_ref):
    """One (tm, tn) output tile of x @ W + b, accumulated over the K grid axis."""
    kk = pl.program_id(2)

    @pl.when(kk == 0)
    def _():
        acc_ref[...] = jnp.zeros_like(acc_ref)

    acc_ref[...] += jnp.dot(x_ref[...], w_ref[...],
                            preferred_element_type=jnp.float32)

    @pl.when(kk == pl.num_programs(2) - 1)
    def _():
        o_ref[...] = (acc_ref[...] + b_ref[...]).astype(o_ref.dtype)


def linear(x2d, w_t, b, *, out_dtype=None, m_tile=256, n_tile=256, k_tile=256):
    """x2d: (M, d_in) @ w_t: (d_in, d_out) + b: (d_out,) -> (M, d_out).

    Operands arrive already in the compute dtype (caller pre-casts weights /
    activations); bias stays f32 and is added to the f32 accumulator."""
    M, d_in = x2d.shape
    d_out = w_t.shape[1]
    out_dtype = x2d.dtype if out_dtype is None else out_dtype
    tm = _pick_tile(M, m_tile, 8)
    tn = _pick_tile(d_out, n_tile, 128)
    tk = _pick_tile(d_in, k_tile, 128)
    grid = (M // tm, d_out // tn, d_in // tk)
    return pl.pallas_call(
        _linear_kernel,
        out_shape=jax.ShapeDtypeStruct((M, d_out), out_dtype),
        grid=grid,
        in_specs=[
            pl.BlockSpec((tm, tk), lambda i, j, kk: (i, kk)),
            pl.BlockSpec((tk, tn), lambda i, j, kk: (kk, j)),
            pl.BlockSpec((1, tn), lambda i, j, kk: (0, j)),
        ],
        out_specs=pl.BlockSpec((tm, tn), lambda i, j, kk: (i, j)),
        scratch_shapes=[pltpu.VMEM((tm, tn), jnp.float32)],
        compiler_params=pltpu.CompilerParams(
            dimension_semantics=("parallel", "parallel", "arbitrary"),
            vmem_limit_bytes=_VMEM_LIMIT),
    )(x2d, w_t, b.reshape(1, d_out).astype(jnp.float32))


# ----------------------------- attention kernel ------------------------------

def _flash_attn_kernel(*refs, num_heads, d_k, has_mask, approx_recip):
    """Online-softmax attention on the (S, d_model) merged-head layout.

    Grid = (batch, q_tiles, kv_tiles); kv is the reduction axis.
    Scratch:
      m_sc  (H, tq, 1)      running row-max per head   (head-major: dense access)
      l_sc  (H, tq, 1)      running denominator per head
      acc_sc(tq, d_model)   running numerator; each head updates its column slot
                            IN PLACE (no concatenate / whole-scratch rewrite).
    """
    if has_mask:
        q_ref, k_ref, v_ref, mask_ref, o_ref, m_sc, l_sc, acc_sc = refs
    else:
        q_ref, k_ref, v_ref, o_ref, m_sc, l_sc, acc_sc = refs
        mask_ref = None

    ki = pl.program_id(2)

    @pl.when(ki == 0)
    def _():
        m_sc[...] = jnp.full_like(m_sc, -jnp.inf)
        l_sc[...] = jnp.zeros_like(l_sc)
        acc_sc[...] = jnp.zeros_like(acc_sc)

    # Mask compare hoisted out of the head loop: one int8 compare per kv step.
    if has_mask:
        mask_zero = mask_ref[...] == 0          # (1 or tq, tkv) bool
        neg = jnp.float32(-1e9)

    mxu_dtype = q_ref.dtype                     # bf16 on the reduced-precision path

    for hh in range(num_heads):
        lo = hh * d_k
        qh = q_ref[:, lo:lo + d_k]              # (tq,  d_k) — slice the ref, not a full load
        kh = k_ref[:, lo:lo + d_k]              # (tkv, d_k)
        vh = v_ref[:, lo:lo + d_k]              # (tkv, d_k)
        # QK^T without an explicit transpose: contract the last dim of both.
        s = lax.dot_general(qh, kh,
                            dimension_numbers=(((1,), (1,)), ((), ())),
                            preferred_element_type=jnp.float32)   # (tq, tkv) f32
        if has_mask:
            s = jnp.where(mask_zero, neg, s)
        # Softmax statistics stay in f32 (v5e has no bf16 VPU/EUP).
        m_p = m_sc[hh]                                            # (tq, 1)
        m_n = jnp.maximum(m_p, jnp.max(s, axis=-1, keepdims=True))
        alpha = jnp.exp(m_p - m_n)
        p = jnp.exp(s - m_n)
        l_sc[hh] = alpha * l_sc[hh] + jnp.sum(p, axis=-1, keepdims=True)
        pv = jnp.dot(p.astype(mxu_dtype), vh,
                     preferred_element_type=jnp.float32)          # (tq, d_k)
        acc_sc[:, lo:lo + d_k] = alpha * acc_sc[:, lo:lo + d_k] + pv
        m_sc[hh] = m_n

    @pl.when(ki == pl.num_programs(2) - 1)
    def _():
        # Per-head normalization in place, then ONE lane-dense (tq, d_model) store.
        for hh in range(num_heads):
            lo = hh * d_k
            inv = pl.reciprocal(l_sc[hh], approx=approx_recip)    # (tq, 1)
            acc_sc[:, lo:lo + d_k] = acc_sc[:, lo:lo + d_k] * inv
        o_ref[...] = acc_sc[...].astype(o_ref.dtype)


def flash_attention(q_arr, k_arr, v_arr, mask, num_heads, d_model, *,
                    q_col=0, k_col=0, v_col=0, q_tile=256, kv_tile=256):
    """q_arr/k_arr/v_arr: (B, S, n*d_model); the q/k/v column block is selected by
    {q,k,v}_col (zero-copy read out of a fused QKV projection result).

    mask: None, or (B|1, 1|Sq, Sk) with nonzero = attend (matches masked_fill(mask==0)).
    Returns (B, Sq, d_model) with heads already merged into d_model columns.
    q_tile/kv_tile default 256 to fill the 256x256 MXU on v6e/v7x (128 is enough on v5e).
    """
    B, Sq, _ = q_arr.shape
    Sk = k_arr.shape[1]
    d_k = d_model // num_heads
    tq = _pick_tile(Sq, q_tile, 8)
    tkv = _pick_tile(Sk, kv_tile, 128)   # multiple of 128 keeps the mask block lane-legal
    grid = (B, Sq // tq, Sk // tkv)

    in_specs = [
        pl.BlockSpec((None, tq, d_model), lambda b, qi, ki, c=q_col: (b, qi, c)),
        pl.BlockSpec((None, tkv, d_model), lambda b, qi, ki, c=k_col: (b, ki, c)),
        pl.BlockSpec((None, tkv, d_model), lambda b, qi, ki, c=v_col: (b, ki, c)),
    ]
    operands = [q_arr, k_arr, v_arr]
    has_mask = mask is not None
    if has_mask:
        mask = jnp.asarray(mask)
        mb, mq, mk = mask.shape
        assert mk == Sk and mb in (1, B) and mq in (1, Sq), "unsupported mask shape"
        mask_i8 = (mask != 0).astype(jnp.int8)   # no f32 / no Sq broadcast in HBM
        mq_blk = tq if mq != 1 else 1

        def mask_map(b, qi, ki, _mb=mb, _mq=mq):
            return (b if _mb != 1 else 0, qi if _mq != 1 else 0, ki)

        in_specs.append(pl.BlockSpec((None, mq_blk, tkv), mask_map))
        operands.append(mask_i8)

    approx_recip = jnp.dtype(q_arr.dtype) != jnp.dtype(jnp.float32)
    kernel = functools.partial(_flash_attn_kernel, num_heads=num_heads, d_k=d_k,
                               has_mask=has_mask, approx_recip=approx_recip)
    return pl.pallas_call(
        kernel,
        out_shape=jax.ShapeDtypeStruct((B, Sq, d_model), q_arr.dtype),
        grid=grid,
        in_specs=in_specs,
        out_specs=pl.BlockSpec((None, tq, d_model), lambda b, qi, ki: (b, qi, 0)),
        scratch_shapes=[
            pltpu.VMEM((num_heads, tq, 1), jnp.float32),   # running max (head-major)
            pltpu.VMEM((num_heads, tq, 1), jnp.float32),   # running denom (head-major)
            pltpu.VMEM((tq, d_model), jnp.float32),        # running numerator
        ],
        compiler_params=pltpu.CompilerParams(
            dimension_semantics=("parallel", "parallel", "arbitrary"),
            vmem_limit_bytes=_VMEM_LIMIT),
    )(*operands)


# --------------------------- Module-level wrapper ----------------------------

def multi_headed_attention(params, query, key, value, mask=None,
                           compute_dtype=jnp.float32):
    """Mirrors MultiHeadedAttention.forward (eval mode, dropout = identity).

    query/key/value: (B, S, d_model) float32.
    mask: optional (B|1, Sq, Sk) or (B|1, 1, Sk); nonzero = attend, 0 = masked.
    compute_dtype: MXU operand / intermediate dtype (jnp.bfloat16 on v6e/v7x halves
                   intermediate HBM traffic); accumulation & softmax stay float32;
                   the module output stays in the input dtype.
    """
    h = params["h"]
    d_model = params["d_model"]
    assert d_model % h == 0
    d_k = d_model // h
    B, Sq, _ = query.shape
    Sk = key.shape[1]
    cdt = compute_dtype

    # Fold 1/sqrt(d_k) into the Q projection; pre-cast weights to the compute dtype
    # (halves weight DMA bytes and the VMEM weight-block footprint on the bf16 path).
    scale = 1.0 / math.sqrt(d_k)
    wq = (params["w_t"][0] * scale).astype(cdt)
    bq = params["b"][0] * scale
    wk = params["w_t"][1].astype(cdt)
    bk = params["b"][1]
    wv = params["w_t"][2].astype(cdt)
    bv = params["b"][2]
    wo = params["w_t"][3].astype(cdt)
    bo = params["b"][3]

    self_attn = (query is key) and (key is value)
    q_in = query.astype(cdt).reshape(B * Sq, d_model)

    if self_attn:
        # Self-attention fast path: ONE projection with the fused (d_in, 3*d_model)
        # weight — one activation read, one long MXU sequence, d_out grid-tiled.
        w3 = jnp.concatenate([wq, wk, wv], axis=1)
        b3 = jnp.concatenate([bq, bk, bv], axis=0)
        qkv = linear(q_in, w3, b3, out_dtype=cdt).reshape(B, Sq, 3 * d_model)
        if d_model % 128 == 0:
            # Zero-copy: flash reads the Q/K/V column blocks straight out of qkv.
            ctx = flash_attention(qkv, qkv, qkv, mask, h, d_model,
                                  q_col=0, k_col=1, v_col=2)
        else:
            q = qkv[:, :, :d_model]
            k = qkv[:, :, d_model:2 * d_model]
            v = qkv[:, :, 2 * d_model:]
            ctx = flash_attention(q, k, v, mask, h, d_model)
    else:
        k_in = key.astype(cdt).reshape(B * Sk, d_model)
        v_in = value.astype(cdt).reshape(B * Sk, d_model)
        q = linear(q_in, wq, bq, out_dtype=cdt).reshape(B, Sq, d_model)
        k = linear(k_in, wk, bk, out_dtype=cdt).reshape(B, Sk, d_model)
        v = linear(v_in, wv, bv, out_dtype=cdt).reshape(B, Sk, d_model)
        ctx = flash_attention(q, k, v, mask, h, d_model)

    out = linear(ctx.reshape(B * Sq, d_model), wo, bo, out_dtype=query.dtype)
    return out.reshape(B, Sq, d_model)


# ------------------------------ Reference (JAX) ------------------------------

def reference(params, query, key, value, mask=None):
    h = params["h"]
    d_model = params["d_model"]
    d_k = d_model // h
    B, Sq, _ = query.shape

    def lin(x, i):
        return x @ params["w_t"][i] + params["b"][i]

    def split(x):
        return x.reshape(B, -1, h, d_k).transpose(0, 2, 1, 3)

    q, k, v = split(lin(query, 0)), split(lin(key, 1)), split(lin(value, 2))
    scores = jnp.einsum("bhqd,bhkd->bhqk", q, k) / math.sqrt(d_k)
    if mask is not None:
        m = mask[:, None, :, :]  # unsqueeze(1): broadcast over heads
        scores = jnp.where(m == 0, -1e9, scores)
    p = jax.nn.softmax(scores, axis=-1)
    x = jnp.einsum("bhqk,bhkd->bhqd", p, v)
    x = x.transpose(0, 2, 1, 3).reshape(B, Sq, d_model)
    return lin(x, 3)


# ----------------------------------- Main ------------------------------------

if __name__ == "__main__":
    # Small shapes: batch=2, heads=4, seq=8, d_model=32 (d_k=8)
    B, S, H, D_MODEL = 2, 8, 4, 32

    root = jax.random.PRNGKey(0)
    keys = jax.random.split(root, 16)

    # Deterministic init of the 4 nn.Linear(d_model, d_model) layers.
    # Weights stored pre-transposed (d_in, d_out): y = x @ w_t + b == x @ W^T + b.
    bound = 1.0 / math.sqrt(D_MODEL)
    w_t = [jax.random.uniform(keys[i], (D_MODEL, D_MODEL),
                              minval=-bound, maxval=bound, dtype=jnp.float32)
           for i in range(4)]
    b = [jax.random.uniform(keys[4 + i], (D_MODEL,),
                            minval=-bound, maxval=bound, dtype=jnp.float32)
         for i in range(4)]
    params = {"h": H, "d_model": D_MODEL, "w_t": w_t, "b": b}

    x = jax.random.normal(keys[8], (B, S, D_MODEL), dtype=jnp.float32)
    q_in = jax.random.normal(keys[9], (B, S, D_MODEL), dtype=jnp.float32)
    k_in = jax.random.normal(keys[10], (B, S, D_MODEL), dtype=jnp.float32)
    v_in = jax.random.normal(keys[11], (B, S, D_MODEL), dtype=jnp.float32)

    causal = jnp.tril(jnp.ones((S, S), dtype=jnp.float32))[None].repeat(B, axis=0)
    lengths = jnp.array([S, S - 3])
    padding = (jnp.arange(S)[None, None, :] < lengths[:, None, None]).astype(jnp.float32)

    # 1) Self-attention (fused QKV path) + causal (B, S, S) mask.
    out1 = jax.block_until_ready(multi_headed_attention(params, x, x, x, mask=causal))
    ref1 = reference(params, x, x, x, mask=causal)
    np.testing.assert_allclose(np.asarray(out1), np.asarray(ref1), rtol=1e-5, atol=1e-5)

    # 2) Distinct q/k/v (separate projections) + (B, 1, S) padding mask.
    out2 = jax.block_until_ready(multi_headed_attention(params, q_in, k_in, v_in, mask=padding))
    ref2 = reference(params, q_in, k_in, v_in, mask=padding)
    np.testing.assert_allclose(np.asarray(out2), np.asarray(ref2), rtol=1e-5, atol=1e-5)

    # 3) No mask.
    out3 = jax.block_until_ready(multi_headed_attention(params, q_in, k_in, v_in, mask=None))
    ref3 = reference(params, q_in, k_in, v_in, mask=None)
    np.testing.assert_allclose(np.asarray(out3), np.asarray(ref3), rtol=1e-5, atol=1e-5)

    # 4) bf16 weights/intermediates (f32 accumulation / f32 softmax) — loose tolerance.
    out4 = jax.block_until_ready(
        multi_headed_attention(params, x, x, x, mask=causal, compute_dtype=jnp.bfloat16))
    np.testing.assert_allclose(np.asarray(out4), np.asarray(ref1), rtol=1e-1, atol=1e-1)

    print("KERNEL_OK")
</pallas_src>

<mosaic_0001>
module attributes {stable_mosaic.version = 11 : i64} {
  func.func @_linear_kernel(%arg0: i32, %arg1: i32, %arg2: i32, %arg3: memref<16x32xf32, #tpu.memory_space<vmem>>, %arg4: memref<32x96xf32, #tpu.memory_space<vmem>>, %arg5: memref<1x96xf32, #tpu.memory_space<vmem>>, %arg6: memref<16x96xf32, #tpu.memory_space<vmem>>, %arg7: memref<16x96xf32, #tpu.memory_space<vmem>>) attributes {dimension_semantics = [#tpu.dimension_semantics<parallel>, #tpu.dimension_semantics<parallel>, #tpu.dimension_semantics<arbitrary>], iteration_bounds = array<i64: 1, 1, 1>, scalar_prefetch = 0 : i64, scratch_operands = 1 : i64, tpu.core_type = #tpu.core_type<tc>, window_params = [{transform_indices = @transform_0, window_bounds = array<i64: 16, 32>}, {transform_indices = @transform_1, window_bounds = array<i64: 32, 96>}, {transform_indices = @transform_2, window_bounds = array<i64: 1, 96>}, {transform_indices = @transform_3, window_bounds = array<i64: 16, 96>}]} {
    %c0_i32 = arith.constant 0 : i32
    %0 = arith.cmpi eq, %arg2, %c0_i32 : i32
    %1 = arith.extui %0 : i1 to i32
    %c0_i32_0 = arith.constant 0 : i32
    %2 = arith.cmpi ne, %1, %c0_i32_0 : i32
    scf.if %2 {
      %cst_10 = arith.constant 0.000000e+00 : f32
      %12 = vector.broadcast %cst_10 : f32 to vector<16x96xf32>
      %c0_11 = arith.constant 0 : index
      %c0_12 = arith.constant 0 : index
      %13 = vector.load %arg7[%c0_11, %c0_12] : memref<16x96xf32, #tpu.memory_space<vmem>>, vector<16x96xf32>
      tpu.vector_store %arg7[%c0_11, %c0_12], %12 {strides = array<i32>} : memref<16x96xf32, #tpu.memory_space<vmem>>, vector<16x96xf32>,
    } else {
    }
    %c0 = arith.constant 0 : index
    %c0_1 = arith.constant 0 : index
    %3 = vector.load %arg7[%c0, %c0_1] : memref<16x96xf32, #tpu.memory_space<vmem>>, vector<16x96xf32>
    %c0_2 = arith.constant 0 : index
    %c0_3 = arith.constant 0 : index
    %4 = vector.load %arg3[%c0_2, %c0_3] : memref<16x32xf32, #tpu.memory_space<vmem>>, vector<16x32xf32>
    %c0_4 = arith.constant 0 : index
    %c0_5 = arith.constant 0 : index
    %5 = vector.load %arg4[%c0_4, %c0_5] : memref<32x96xf32, #tpu.memory_space<vmem>>, vector<32x96xf32>
    %cst = arith.constant dense<0.000000e+00> : vector<16x96xf32>
    %6 = tpu.matmul %4, %5, %cst {dimension_numbers = #tpu.dot_dimension_numbers<[1], [0], [0], [1], [0, 0, 1, 1], [], []>} : vector<16x32xf32>, vector<32x96xf32>, vector<16x96xf32> -> vector<16x96xf32>
    %7 = arith.addf %3, %6 : vector<16x96xf32>
    %c0_6 = arith.constant 0 : index
    %c0_7 = arith.constant 0 : index
    %8 = vector.load %arg7[%c0_6, %c0_7] : memref<16x96xf32, #tpu.memory_space<vmem>>, vector<16x96xf32>
    tpu.vector_store %arg7[%c0_6, %c0_7], %7 {strides = array<i32>} : memref<16x96xf32, #tpu.memory_space<vmem>>, vector<16x96xf32>,
    %c0_i32_8 = arith.constant 0 : i32
    %9 = arith.cmpi eq, %arg2, %c0_i32_8 : i32
    %10 = arith.extui %9 : i1 to i32
    %c0_i32_9 = arith.constant 0 : i32
    %11 = arith.cmpi ne, %10, %c0_i32_9 : i32
    scf.if %11 {
      %c0_10 = arith.constant 0 : index
      %c0_11 = arith.constant 0 : index
      %12 = vector.load %arg7[%c0_10, %c0_11] : memref<16x96xf32, #tpu.memory_space<vmem>>, vector<16x96xf32>
      %c0_12 = arith.constant 0 : index
      %c0_13 = arith.constant 0 : index
      %13 = vector.load %arg5[%c0_12, %c0_13] : memref<1x96xf32, #tpu.memory_space<vmem>>, vector<1x96xf32>
      %14 = vector.broadcast %13 : vector<1x96xf32> to vector<16x96xf32>
      %15 = arith.addf %12, %14 : vector<16x96xf32>
      %c0_14 = arith.constant 0 : index
      %c0_15 = arith.constant 0 : index
      %16 = vector.load %arg6[%c0_14, %c0_15] : memref<16x96xf32, #tpu.memory_space<vmem>>, vector<16x96xf32>
      tpu.vector_store %arg6[%c0_14, %c0_15], %15 {strides = array<i32>} : memref<16x96xf32, #tpu.memory_space<vmem>>, vector<16x96xf32>,
    } else {
    }
    return
  }
  func.func @transform_0(%arg0: i32, %arg1: i32, %arg2: i32) -> (i32, i32) {
    %c0_i32 = arith.constant 0 : i32
    return %arg0, %arg2 : i32, i32
  }
  func.func @transform_1(%arg0: i32, %arg1: i32, %arg2: i32) -> (i32, i32) {
    %c0_i32 = arith.constant 0 : i32
    return %arg2, %arg1 : i32, i32
  }
  func.func @transform_2(%arg0: i32, %arg1: i32, %arg2: i32) -> (i32, i32) {
    %c0_i32 = arith.constant 0 : i32
    %c0_i32_0 = arith.constant 0 : i32
    return %c0_i32, %arg1 : i32, i32
  }
  func.func @transform_3(%arg0: i32, %arg1: i32, %arg2: i32) -> (i32, i32) {
    %c0_i32 = arith.constant 0 : i32
    return %arg0, %arg1 : i32, i32
  }
}

</mosaic_0001>

<llo_original>
// kernel: tpu_custom_call.1
$region0: #{tpu_custom_call.1}
  #allocation0 [shape = 'u32[]', space=smem, size = 0x4, offset = 0x4, fixed_abs, tag = 'smem constant byte address 0x4 - core index']
  #allocation1 [shape = 'u32[144,128]{1,0:T(1,128)}', space=vmem, size = 0x12000, scoped, tag = 'internal scratch']
  #allocation2 [shape = 'f32[16,96]{1,0:T(8,128)}', space=vmem, size = 0x2000, scoped, tag = 'scratch operand']
  %s0 = inlined_call_operand.hbm [shape: f32[16,32], index: 0, kind: input, shape index: {}]
  %s1 = inlined_call_operand.hbm [shape: f32[32,96], index: 1, kind: input, shape index: {}]
  %s2 = inlined_call_operand.hbm [shape: f32[1,96], index: 2, kind: input, shape index: {}]
  %s3 = inlined_call_operand.hbm [shape: f32[16,96], index: 3, kind: output, shape index: {}]
  %s4 = sld [smem:[#allocation0]]
  $region42: #{tpu_custom_call.1} parent=0
    _
  %s6 = ssub.s32 1, %s4
  %s7 = scalar_select 0, %s6, %s4
  $region1: #{tpu_custom_call.1} parent=0
    #allocation3 [shape = 'u8[8192]{0}', space=vmem, size = 0x2000, scoped, tag = 'input window, operand 0, single buffered']
    #allocation4 [shape = 's32[1]{0}', space=sflag, size = 0x4, scoped, tag = 'scoped memory for tpu_custom_call.1']
    #allocation5 [shape = 's32[1]{0}', space=sflag, size = 0x4, scoped, tag = 'scoped memory for tpu_custom_call.1']
    #allocation6 [shape = 'u8[16384]{0}', space=vmem, size = 0x4000, scoped, tag = 'input window, operand 1, single buffered']
    #allocation7 [shape = 's32[1]{0}', space=sflag, size = 0x4, scoped, tag = 'scoped memory for tpu_custom_call.1']
    #allocation8 [shape = 'u8[512]{0}', space=vmem, size = 0x400, scoped, tag = 'input window, operand 2, single buffered']
    #allocation9 [shape = 'u8[8192]{0}', space=vmem, size = 0x2000, scoped, tag = 'output window, operand 0, single buffered']
    %8 = vsyncpa [#allocation4], 0
    %9 = vsyncpa [#allocation7], 0
    %10 = vsyncpa [#allocation5], 0
    // Predicated region
    $region2: #{tpu_custom_call.1} parent=1 // pred_check
      _
    $region3: #{tpu_custom_call.1} parent=1 // pred_check_branch
      %12 = sbr.rel (0) target = $region5
    $region4: #{tpu_custom_call.1} parent=1 // pred_region
      %s14 = ssub.s32 256, 256
      %15 = vsyncadd [#allocation4], %s14
      %s16 = sshll.u32 [#allocation3], 4
      %s17 = int_to_ptr.vmem [resolvable:$true] %s16
      %22 = dma.hbm_to_vmem [thread:$0]  %s0, 256, %s17, [#allocation4], 128, 128, 8
    $region5: #{tpu_custom_call.1} parent=1 // pred_fallthru
      _
    // Predicated region
    $region6: #{tpu_custom_call.1} parent=1 // pred_check
      _
    $region7: #{tpu_custom_call.1} parent=1 // pred_check_branch
      %24 = sbr.rel (0) target = $region9
    $region8: #{tpu_custom_call.1} parent=1 // pred_region
      %s26 = ssub.s32 512, 512
      %27 = vsyncadd [#allocation7], %s26
      %s28 = sshll.u32 [#allocation6], 4
      %s29 = int_to_ptr.vmem [resolvable:$true] %s28
      %34 = dma.hbm_to_vmem [thread:$0]  %s1, 512, %s29, [#allocation7], 128, 128, 8
    $region9: #{tpu_custom_call.1} parent=1 // pred_fallthru
      _
    // Predicated region
    $region10: #{tpu_custom_call.1} parent=1 // pred_check
      _
    $region11: #{tpu_custom_call.1} parent=1 // pred_check_branch
      %36 = sbr.rel (0) target = $region13
    $region12: #{tpu_custom_call.1} parent=1 // pred_region
      %s38 = ssub.s32 16, 16
      %39 = vsyncadd [#allocation7], %s38
      %s41 = sshll.u32 [#allocation8], 4
      %s42 = int_to_ptr.vmem [resolvable:$true] %s41
      %44 = dma.hbm_to_vmem [thread:$0]  %s2, 16, %s42, [#allocation7]
    $region13: #{tpu_custom_call.1} parent=1 // pred_fallthru
      _
    // Predicated region
    $region14: #{tpu_custom_call.1} parent=1 // pred_check
      _
    $region15: #{tpu_custom_call.1} parent=1 // pred_check_branch
      %46 = sbr.rel (0) target = $region17
    $region16: #{tpu_custom_call.1} parent=1 // pred_region
      %47 = dma.done [#allocation4], 256
    $region17: #{tpu_custom_call.1} parent=1 // pred_fallthru
      _
    // Predicated region
    $region18: #{tpu_custom_call.1} parent=1 // pred_check
      _
    $region19: #{tpu_custom_call.1} parent=1 // pred_check_branch
      %49 = sbr.rel (0) target = $region21
    $region20: #{tpu_custom_call.1} parent=1 // pred_region
      %50 = dma.done [#allocation7], 512
    $region21: #{tpu_custom_call.1} parent=1 // pred_fallthru
      _
    // Predicated region
    $region22: #{tpu_custom_call.1} parent=1 // pred_check
      _
    $region23: #{tpu_custom_call.1} parent=1 // pred_check_branch
      %52 = sbr.rel (0) target = $region25
    $region24: #{tpu_custom_call.1} parent=1 // pred_region
      %53 = dma.done [#allocation7], 16
    $region25: #{tpu_custom_call.1} parent=1 // pred_fallthru
      _
    %p54 = scmp.eq.s32.totalorder 0, 0
    // Predicated region
    $region26: #{tpu_custom_call.1} parent=1 // pred_check
      %p55 = pneg %p54
    $region27: #{tpu_custom_call.1} parent=1 // pred_check_branch
      %57 = sbr.rel (%p55) target = $region29
    $region28: #{tpu_custom_call.1} parent=1 // pred_region
      %vm58 = vcmask 785408
      %59 = vst.msk [vmem:[#allocation2] sm:$0xff] %vm58, 0.0
      %60 = vst.msk [vmem:[#allocation2 + $0x8] sm:$0xff] %vm58, 0.0
    $region29: #{tpu_custom_call.1} parent=1 // pred_fallthru
      _
    %v61 = vld [vmem:[#allocation2] sm:$0xff]
    %v62 = vld [vmem:[#allocation2 + $0x8] sm:$0xff]
    %v63 = vld [vmem:[#allocation3] sm:$0xff]
    %v64 = vld [vmem:[#allocation3 + $0x8] sm:$0xff]
    %v65 = vld [vmem:[#allocation6] sm:$0xff]
    %v66 = vld [vmem:[#allocation6 + $0x8] sm:$0xff]
    %v67 = vld [vmem:[#allocation6 + $0x10] sm:$0xff]
    %v68 = vld [vmem:[#allocation6 + $0x18] sm:$0xff]
    %vm69 = vcmask 261120
    %v71 = vsel %vm69, %v63, 0
    %v74 = vsel %vm69, %v64, 0
    %76 = vmatprep.subr.mxu0 0.0
    %77 = vmatpush1.msra.mxu0 %v65
    %78 = vmatprep.subr.mxu0 0.0
    %79 = vmatpush1.msra.mxu0 %v66
    %80 = vmatprep.subr.mxu0 0.0
    %81 = vmatpush1.msra.mxu0 %v67
    %82 = vmatprep.subr.mxu0 0.0
    %83 = vmatpush1.msra.mxu0 %v68
    %84 = vmatprep.subr.mxu0 0.0
    %85 = vmatpush1.msra.mxu0 0.0
    %86 = vmatprep.subr.mxu0 0.0
    %87 = vmatpush1.msra.mxu0 0.0
    %88 = vmatprep.subr.mxu0 0.0
    %89 = vmatpush1.msra.mxu0 0.0
    %90 = vmatprep.subr.mxu0 0.0
    %91 = vmatpush1.msra.mxu0 0.0
    %92 = vmatprep.subr.mxu0 0.0
    %93 = vmatpush1.msra.mxu0 0.0
    %94 = vmatprep.subr.mxu0 0.0
    %95 = vmatpush1.msra.mxu0 0.0
    %96 = vmatprep.subr.mxu0 0.0
    %97 = vmatpush1.msra.mxu0 0.0
    %98 = vmatprep.subr.mxu0 0.0
    %99 = vmatpush1.msra.mxu0 0.0
    %100 = vmatprep.subr.mxu0 0.0
    %101 = vmatpush1.msra.mxu0 0.0
    %102 = vmatprep.subr.mxu0 0.0
    %103 = vmatpush1.msra.mxu0 0.0
    %104 = vmatprep.subr.mxu0 0.0
    %105 = vmatpush1.msra.mxu0 0.0
    %106 = vmatprep.subr.mxu0 0.0
    %107 = vmatpush1.msra.mxu0 0.0
    %108 = vmatprep.subr.mxu0 0.0
    %109 = vmatpush1.msra.mxu0 0.0
    %110 = vmatprep.subr.mxu0 0.0
    %111 = vmatpush1.msra.mxu0 0.0
    %112 = vmatprep.subr.mxu0 0.0
    %113 = vmatpush1.msra.mxu0 0.0
    %114 = vmatprep.subr.mxu0 0.0
    %115 = vmatpush1.msra.mxu0 0.0
    %116 = vmatprep.subr.mxu0 0.0
    %117 = vmatpush1.msra.mxu0 0.0
    %118 = vmatprep.subr.mxu0 0.0
    %119 = vmatpush1.msra.mxu0 0.0
    %120 = vmatprep.subr.mxu0 0.0
    %121 = vmatpush1.msra.mxu0 0.0
    %122 = vmatprep.subr.mxu0 0.0
    %123 = vmatpush1.msra.mxu0 0.0
    %124 = vmatprep.subr.mxu0 0.0
    %125 = vmatpush1.msra.mxu0 0.0
    %126 = vmatprep.subr.mxu0 0.0
    %127 = vmatpush1.msra.mxu0 0.0
    %128 = vmatprep.subr.mxu0 0.0
    %129 = vmatpush1.msra.mxu0 0.0
    %130 = vmatprep.subr.mxu0 0.0
    %131 = vmatpush1.msra.mxu0 0.0
    %132 = vmatprep.subr.mxu0 0.0
    %133 = vmatpush1.msra.mxu0 0.0
    %134 = vmatprep.subr.mxu0 0.0
    %135 = vmatpush1.msra.mxu0 0.0
    %136 = vmatprep.subr.mxu0 0.0
    %137 = vmatpush1.msra.mxu0 0.0
    %138 = vmatprep.subr.mxu0 0.0
    %139 = vmatpush1.msra.mxu0 0.0
    %140 = vmatprep.mubr.f32.mxu0 0.0
    %141 = vmatmul.mubr.f32.gmra.mrb[0].mxu0 %v71
    %v142 = vpop.f32.mrb[0].mxu0
    %v143 = vadd.f32 0.0, %v142
    %v144 = vpop.f32.mrb[0].mxu0
    %145 = vmatprep.mubr.f32.mxu0 0.0
    %146 = vmatmul.mubr.f32.gmra.mrb[0].mxu0 %v74
    %v147 = vpop.f32.mrb[0].mxu0
    %v148 = vadd.f32 0.0, %v147
    %v149 = vpop.f32.mrb[0].mxu0
    %150 = vdwg.mxu0
    %v151 = vadd.f32 %v61, %v143
    %v152 = vadd.f32 %v62, %v148
    %vm153 = vcmask 785408
    %154 = vst.msk [vmem:[#allocation2] sm:$0xff] %vm153, %v151
    %155 = vst.msk [vmem:[#allocation2 + $0x8] sm:$0xff] %vm153, %v152
    // Predicated region
    $region30: #{tpu_custom_call.1} parent=1 // pred_check
      %p156 = pneg %p54
    $region31: #{tpu_custom_call.1} parent=1 // pred_check_branch
      %158 = sbr.rel (%p156) target = $region33
    $region32: #{tpu_custom_call.1} parent=1 // pred_region
      %v159 = vld [vmem:[#allocation2] sm:$0xff]
      %v160 = vld [vmem:[#allocation2 + $0x8] sm:$0xff]
      %v161 = vld [vmem:[#allocation8] sm:$0x1]
      %v163 = vlaneseq
      %v164 = vshrl.u32 %v163, 7
      %v165 = vsub.s32 0, %v164
      %v166 = vrot.slane %v161, %v165
      %v168 = vadd.f32 %v159, %v166
      %v169 = vadd.f32 %v160, %v166
      %170 = vst.msk [vmem:[#allocation9] sm:$0xff] %vm153, %v168
      %171 = vst.msk [vmem:[#allocation9 + $0x8] sm:$0xff] %vm153, %v169
    $region33: #{tpu_custom_call.1} parent=1 // pred_fallthru
      _
    // Predicated region
    $region34: #{tpu_custom_call.1} parent=1 // pred_check
      _
    $region35: #{tpu_custom_call.1} parent=1 // pred_check_branch
      %173 = sbr.rel (0) target = $region37
    $region36: #{tpu_custom_call.1} parent=1 // pred_region
      %s175 = ssub.s32 256, 256
      %176 = vsyncadd [#allocation5], %s175
      %s177 = sshll.u32 [#allocation9], 4
      %s178 = int_to_ptr.vmem [resolvable:$true] %s177
      %183 = dma.vmem_to_hbm [thread:$0]  %s178, 256, %s3, [#allocation5], 128, 128, 8
    $region37: #{tpu_custom_call.1} parent=1 // pred_fallthru
      _
    // Predicated region
    $region38: #{tpu_custom_call.1} parent=1 // pred_check
      _
    $region39: #{tpu_custom_call.1} parent=1 // pred_check_branch
      %185 = sbr.rel (0) target = $region41
    $region40: #{tpu_custom_call.1} parent=1 // pred_region
      %186 = dma.done [#allocation5], 256
    $region41: #{tpu_custom_call.1} parent=1 // pred_fallthru
      _
    %187 = vsyncpa [#allocation4], 1
    %188 = vsyncpa [#allocation7], 1
    %189 = vsyncpa [#allocation5], 1

</llo_original>
